<compile_context>
chip_gen: v6e
topology: v6e:2x2x1
jax: 0.10.0
libtpu: 0.0.40
codegen_flags: <defaults>
</compile_context>

<pallas_src>
import math

import jax
import jax.numpy as jnp
from jax.experimental import pallas as pl
from jax.experimental.pallas import tpu as pltpu

_LANES = 128       # lane width of a vreg
_SUBLANES = 8      # sublane count of a vreg
_TILE_M = 512      # rows per block (multiple of 8); 512x128 f32 = 256 KiB


def _identity_kernel(x_ref, o_ref):
    # The whole hot path of Net.forward: y = x (tile copy through VMEM).
    o_ref[...] = x_ref[...]


def _identity_pallas_2d(x2d: jax.Array) -> jax.Array:
    rows, lanes = x2d.shape
    tile_m = min(_TILE_M, rows)  # rows is always a multiple of 8 (see pad)
    grid = (pl.cdiv(rows, tile_m),)
    return pl.pallas_call(
        _identity_kernel,
        out_shape=jax.ShapeDtypeStruct((rows, lanes), x2d.dtype),
        grid=grid,
        in_specs=[pl.BlockSpec((tile_m, lanes), lambda i: (i, 0))],
        out_specs=pl.BlockSpec((tile_m, lanes), lambda i: (i, 0)),
        input_output_aliases={0: 0},
        compiler_params=pltpu.CompilerParams(
            dimension_semantics=("parallel",),
        ),
    )(x2d)


@jax.jit
def net_forward(x: jax.Array) -> jax.Array:
    """Pallas implementation of Net.forward(x) == x."""
    orig_shape = x.shape
    total = math.prod(orig_shape) if len(orig_shape) > 0 else 1

    # Lane-dense view: pad flat length up to a multiple of 8*128 so the 2D
    # view is (rows, 128) with rows a multiple of 8 (clean (8,128) tiling).
    chunk = _SUBLANES * _LANES
    padded_total = ((total + chunk - 1) // chunk) * chunk

    flat = x.reshape((total,))
    if padded_total != total:
        flat = jnp.pad(flat, (0, padded_total - total))
    x2d = flat.reshape((padded_total // _LANES, _LANES))

    out2d = _identity_pallas_2d(x2d)

    out_flat = out2d.reshape((padded_total,))
    if padded_total != total:
        out_flat = out_flat[:total]
    return out_flat.reshape(orig_shape)


if __name__ == "__main__":
    key = jax.random.PRNGKey(0)

    # Small NCHW input consistent with the module (image-classifier stub).
    x = jax.random.normal(key, (2, 4, 16, 16), dtype=jnp.float32)
    y = net_forward(x)
    jax.block_until_ready(y)
    assert y.shape == x.shape
    assert y.dtype == x.dtype
    assert bool(jnp.allclose(y, x)), "identity kernel mismatch"

    # Exercise the padding path (total elements not a multiple of 128).
    x2 = jax.random.normal(key, (2, 1, 28, 28), dtype=jnp.float32)
    y2 = net_forward(x2)
    jax.block_until_ready(y2)
    assert y2.shape == x2.shape
    assert bool(jnp.allclose(y2, x2)), "identity kernel mismatch (padded path)"

    print("KERNEL_OK")
</pallas_src>

<mosaic_0001>
module attributes {stable_mosaic.version = 11 : i64} {
  func.func @_identity_kernel(%arg0: i32, %arg1: memref<16x128xf32, #tpu.memory_space<vmem>>, %arg2: memref<16x128xf32, #tpu.memory_space<vmem>>) attributes {dimension_semantics = [#tpu.dimension_semantics<parallel>], iteration_bounds = array<i64: 1>, scalar_prefetch = 0 : i64, scratch_operands = 0 : i64, tpu.core_type = #tpu.core_type<tc>, window_params = [{transform_indices = @transform_0, window_bounds = array<i64: 16, 128>}, {transform_indices = @transform_1, window_bounds = array<i64: 16, 128>}]} {
    %c0 = arith.constant 0 : index
    %c0_0 = arith.constant 0 : index
    %0 = vector.load %arg1[%c0, %c0_0] : memref<16x128xf32, #tpu.memory_space<vmem>>, vector<16x128xf32>
    %c0_1 = arith.constant 0 : index
    %c0_2 = arith.constant 0 : index
    %1 = vector.load %arg2[%c0_1, %c0_2] : memref<16x128xf32, #tpu.memory_space<vmem>>, vector<16x128xf32>
    tpu.vector_store %arg2[%c0_1, %c0_2], %0 {strides = array<i32>} : memref<16x128xf32, #tpu.memory_space<vmem>>, vector<16x128xf32>,
    return
  }
  func.func @transform_0(%arg0: i32) -> (i32, i32) {
    %c0_i32 = arith.constant 0 : i32
    %c0_i32_0 = arith.constant 0 : i32
    return %arg0, %c0_i32 : i32, i32
  }
  func.func @transform_1(%arg0: i32) -> (i32, i32) {
    %c0_i32 = arith.constant 0 : i32
    %c0_i32_0 = arith.constant 0 : i32
    return %arg0, %c0_i32 : i32, i32
  }
}

</mosaic_0001>

<llo_original>
// kernel: net_forward.1
$region0: #{net_forward.1}
  #allocation0 [shape = 'u32[]', space=smem, size = 0x4, offset = 0x4, fixed_abs, tag = 'smem constant byte address 0x4 - core index']
  #allocation1 [shape = 'u32[144,128]{1,0:T(1,128)}', space=vmem, size = 0x12000, scoped, tag = 'internal scratch']
  %s0 = inlined_call_operand.vmem [shape: f32[16,128], index: 0, kind: input, shape index: {}, may-alias: {0,1}]
  %s1 = inlined_call_operand.vmem [shape: f32[16,128], index: 1, kind: output, shape index: {}, may-alias: {0,1}]
  %s2 = sld [smem:[#allocation0]]
  $region14: #{net_forward.1} parent=0
    _
  %s4 = ssub.s32 1, %s2
  %s5 = scalar_select 0, %s4, %s2
  // Predicated region
  $region2: #{net_forward.1} parent=0 // pred_check
    _
  $region3: #{net_forward.1} parent=0 // pred_check_branch
    %7 = sbr.rel (0) target = $region5
  $region4: #{net_forward.1} parent=0 // pred_region
    _
  $region5: #{net_forward.1} parent=0 // pred_fallthru
    _
  %v8 = vld [vmem:[%s0] sm:$0xff]
  %v9 = vld [vmem:[%s0 + $0x8] sm:$0xff]
  %10 = vst [vmem:[%s1] sm:$0xff] %v8
  %11 = vst [vmem:[%s1 + $0x8] sm:$0xff] %v9
  // Predicated region
  $region6: #{net_forward.1} parent=0 // pred_check
    _
  $region7: #{net_forward.1} parent=0 // pred_check_branch
    %13 = sbr.rel (0) target = $region9
  $region8: #{net_forward.1} parent=0 // pred_region
    _
  $region9: #{net_forward.1} parent=0 // pred_fallthru
    _
  // Predicated region
  $region10: #{net_forward.1} parent=0 // pred_check
    _
  $region11: #{net_forward.1} parent=0 // pred_check_branch
    %15 = sbr.rel (0) target = $region13
  $region12: #{net_forward.1} parent=0 // pred_region
    _
  $region13: #{net_forward.1} parent=0 // pred_fallthru
    _

</llo_original>
